<compile_context>
chip_gen: v7x
topology: tpu7x:2x2x1
jax: 0.10.0
libtpu: 0.0.40
codegen_flags: <defaults>
</compile_context>

<pallas_src>
import math
import jax
import jax.numpy as jnp
from jax.experimental import pallas as pl
from jax.experimental.pallas import tpu as pltpu


# --------------------------------------------------------------------------- #
# Kernels
# --------------------------------------------------------------------------- #
def _ffn_kernel_scratch(x_ref, w1_ref, b1_ref, w2_ref, b2_ref, o_ref, acc_ref):
    """One (row-tile, out-col-tile, d_ff-chunk) step with fp32 VMEM scratch."""
    f = pl.program_id(2)

    @pl.when(f == 0)
    def _init():
        acc_ref[...] = jnp.zeros_like(acc_ref)

    # (tm, d_model) @ (d_model, tf) on the MXU, fp32 accumulation.
    h = jnp.dot(x_ref[...], w1_ref[...], preferred_element_type=jnp.float32)
    h = jnp.maximum(h + b1_ref[...].astype(jnp.float32), 0.0)   # bias + ReLU
    # (tm, tf) @ (tf, tn), accumulated in fp32.
    acc_ref[...] += jnp.dot(h.astype(w2_ref.dtype), w2_ref[...],
                            preferred_element_type=jnp.float32)

    @pl.when(f == pl.num_programs(2) - 1)
    def _finalize():
        o_ref[...] = (acc_ref[...] + b2_ref[...].astype(jnp.float32)
                      ).astype(o_ref.dtype)


def _ffn_kernel_inplace(x_ref, w1_ref, b1_ref, w2_ref, b2_ref, o_ref):
    """float32 output: accumulate directly into the resident output block
    (its block index is constant over the f axis), saving tm*tn*4 B of VMEM
    and the finalize copy."""
    f = pl.program_id(2)

    @pl.when(f == 0)
    def _init():
        o_ref[...] = jnp.broadcast_to(b2_ref[...].astype(o_ref.dtype),
                                      o_ref.shape)

    h = jnp.dot(x_ref[...], w1_ref[...], preferred_element_type=jnp.float32)
    h = jnp.maximum(h + b1_ref[...].astype(jnp.float32), 0.0)
    o_ref[...] += jnp.dot(h.astype(w2_ref.dtype), w2_ref[...],
                          preferred_element_type=jnp.float32)


# --------------------------------------------------------------------------- #
# Tile / budget selection
# --------------------------------------------------------------------------- #
def _round_up(x, m):
    return -(-x // m) * m


def _device_kind():
    try:
        return jax.devices()[0].device_kind.lower()
    except Exception:
        return ""


def _vmem_capacity_bytes():
    """Physical VMEM of the local chip; conservative 64 MiB fallback."""
    try:
        info = pltpu.get_tpu_info()
        for name in ("vmem_capacity_bytes", "vmem_bytes", "vmem_size_bytes",
                     "vmem_capacity", "vmem_size"):
            v = getattr(info, name, None)
            if isinstance(v, (int, float)) and v > 0:
                return int(v)
    except Exception:
        pass
    kind = _device_kind()
    if "v5" in kind or "v6" in kind:
        return 128 << 20
    return 64 << 20          # v7x / unknown: assume the small-VMEM generation


def _tm_target(itemsize):
    """Row-tile target per generation (weight re-streaming intensity = tm)."""
    kind = _device_kind()
    if "v6" in kind or "v5p" in kind:
        tgt = 1024           # ridge ~670 FLOP/byte on v6e: keep tm large
    elif "v5" in kind:
        tgt = 512            # v5e: ridge ~240, tm=512 already compute-bound
    else:
        tgt = 512            # v7x (ridge ~270) / unknown
    if itemsize >= 4:        # fp32 MXU throughput is much lower
        tgt = min(tgt, 512)
    return tgt


def _estimate_vmem(tm, tn, tf, d_model, in_b, w_b, out_b, acc_b):
    e = 2 * tm * d_model * in_b              # x tiles (double-buffered)
    e += 2 * tm * tn * out_b                 # output tiles
    e += 2 * (d_model * tf + 8 * tf) * w_b   # w1 + b1 slabs
    e += 2 * (tf * tn + 8 * tn) * w_b        # w2 + b2 slabs
    e += tm * tn * acc_b                     # fp32 accumulator scratch
    e += tm * tf * (4 + w_b)                 # fp32 h chunk + narrow cast temp
    e += tm * tn * 4                         # fp32 second-matmul result temp
    return e


def _select_tiles(M, d_model, d_ff, in_b, w_b, out_b, acc_b,
                  budget, tm_target, sub):
    def est(tm, tn, tf):
        return _estimate_vmem(tm, tn, tf, d_model, in_b, w_b, out_b, acc_b)

    tm = max(sub, min(tm_target, _round_up(M, sub)))

    # 1) Keep both weight matrices fully VMEM-resident (fetched once, reused by
    #    every row tile) when they take at most ~half the budget.
    w_bytes = 2 * ((d_model + 8) * d_ff + (d_ff + 8) * d_model) * w_b
    if w_bytes <= budget // 2:
        t = tm
        while True:
            if est(t, d_model, d_ff) <= budget:
                return t, d_model, d_ff
            nt = max(sub, _round_up(t // 2, sub))
            if nt >= t or nt < max(sub, 128):
                break
            t = nt

    # 2) Streamed weights: shrink tf (free), then tn (only multiplies w1
    #    re-streaming), then tm (last: it sets arithmetic intensity).
    tf = d_ff if d_ff <= 512 else 512
    tn = d_model
    while est(tm, tn, tf) > budget and tf > 256:
        tf = max(256, tf // 2)
    while est(tm, tn, tf) > budget and tn > 1024 and tn % 256 == 0:
        tn //= 2
    while est(tm, tn, tf) > budget and tm > max(sub, 256):
        tm = max(max(sub, 256), _round_up(tm // 2, sub))
    while est(tm, tn, tf) > budget and tf > 128:
        tf = max(128, tf // 2)
    while est(tm, tn, tf) > budget and tm > sub:
        tm = max(sub, _round_up(tm // 2, sub))
    return tm, tn, tf


# --------------------------------------------------------------------------- #
# Wrapper
# --------------------------------------------------------------------------- #
def feed_forward(x, w1, b1, w2, b2, *, tm=None, tn=None, tf=None):
    """x: (batch, seq, d_model). Returns relu(x @ w1 + b1) @ w2 + b2."""
    batch, seq, d_model = x.shape
    d_ff = w1.shape[1]
    assert w1.shape == (d_model, d_ff) and w2.shape == (d_ff, d_model)
    M = batch * seq

    in_b = jnp.dtype(x.dtype).itemsize
    w_b = jnp.dtype(w1.dtype).itemsize
    out_dtype = x.dtype
    out_b = in_b
    use_scratch = jnp.dtype(out_dtype) != jnp.dtype(jnp.float32)
    acc_b = 4 if use_scratch else 0

    # Packed-sublane multiple for the row tile (16 for bf16, 32 for 8-bit).
    sub = {1: 32, 2: 16}.get(in_b, 8)

    capacity = _vmem_capacity_bytes()
    budget = (3 * capacity) // 5                       # solve tiles at ~60%
    a_tm, a_tn, a_tf = _select_tiles(M, d_model, d_ff, in_b, w_b, out_b,
                                     acc_b, budget, _tm_target(in_b), sub)
    tm = a_tm if tm is None else max(sub, _round_up(tm, sub))
    tn = a_tn if tn is None else tn
    tf = a_tf if tf is None else tf

    # If tf does not divide d_ff, zero-pad the *weights* along d_ff (exact:
    # relu(x@0 + 0) = 0 and padded w2 rows are zero). Activations are never
    # padded; ragged M is handled by the cdiv grid with a masked tail block.
    d_ff_pad = _round_up(d_ff, tf)
    if d_ff_pad != d_ff:
        pad = d_ff_pad - d_ff
        w1 = jnp.pad(w1, ((0, 0), (0, pad)))
        b1 = jnp.pad(b1, ((0, pad),))
        w2 = jnp.pad(w2, ((0, pad), (0, 0)))

    x2d = x.reshape(M, d_model)
    b1_2d = b1.reshape(1, d_ff_pad)
    b2_2d = b2.reshape(1, d_model)

    grid = (pl.cdiv(M, tm), pl.cdiv(d_model, tn), d_ff_pad // tf)

    est = _estimate_vmem(tm, tn, tf, d_model, in_b, w_b, out_b, acc_b)
    # Cap at 3/4 of physical VMEM: ~48 MiB on 64-MiB v7x (headroom for Mosaic
    # internal scratch), ~96 MiB on 128-MiB v5e/v6e (no artificial 64-MiB cap).
    vmem_limit = int(min((3 * capacity) // 4,
                         max(est * 5 // 4 + (2 << 20), 32 << 20)))

    kernel = _ffn_kernel_scratch if use_scratch else _ffn_kernel_inplace
    scratch = ((pltpu.VMEM((tm, tn), jnp.float32),) if use_scratch else ())

    # TODO(synk): if profiling on v7x shows exposed weight DMA at small tm,
    # add pipeline_mode=pl.Buffered(3) to the w1/w2 BlockSpecs.
    out2d = pl.pallas_call(
        kernel,
        out_shape=jax.ShapeDtypeStruct((M, d_model), out_dtype),
        grid_spec=pltpu.PrefetchScalarGridSpec(
            num_scalar_prefetch=0,
            grid=grid,
            in_specs=[
                pl.BlockSpec((tm, d_model), lambda i, j, f: (i, 0)),   # x
                pl.BlockSpec((d_model, tf), lambda i, j, f: (0, f)),   # w1
                pl.BlockSpec((1, tf),       lambda i, j, f: (0, f)),   # b1
                pl.BlockSpec((tf, tn),      lambda i, j, f: (f, j)),   # w2
                pl.BlockSpec((1, tn),       lambda i, j, f: (0, j)),   # b2
            ],
            out_specs=pl.BlockSpec((tm, tn), lambda i, j, f: (i, j)),
            scratch_shapes=scratch,
        ),
        compiler_params=pltpu.CompilerParams(
            dimension_semantics=("parallel", "parallel", "arbitrary"),
            vmem_limit_bytes=vmem_limit),
    )(x2d, w1, b1_2d, w2, b2_2d)

    return out2d.reshape(batch, seq, d_model)


# --------------------------------------------------------------------------- #
# Params / reference / tests
# --------------------------------------------------------------------------- #
def init_feed_forward_params(key, d_model, d_ff, dtype=jnp.float32):
    """Deterministic init mirroring nn.Linear (uniform +/- 1/sqrt(fan_in))."""
    k1, k2, k3, k4 = jax.random.split(key, 4)
    bound1 = 1.0 / math.sqrt(d_model)
    bound2 = 1.0 / math.sqrt(d_ff)
    # stored transposed vs. PyTorch: (in_features, out_features)
    w1 = jax.random.uniform(k1, (d_model, d_ff), dtype, -bound1, bound1)
    b1 = jax.random.uniform(k2, (d_ff,), dtype, -bound1, bound1)
    w2 = jax.random.uniform(k3, (d_ff, d_model), dtype, -bound2, bound2)
    b2 = jax.random.uniform(k4, (d_model,), dtype, -bound2, bound2)
    return w1, b1, w2, b2


def _reference(x, w1, b1, w2, b2):
    return jnp.maximum(x @ w1 + b1, 0.0) @ w2 + b2


if __name__ == "__main__":
    key = jax.random.PRNGKey(0)

    # Test 1: small fp32, single tile, fully-resident weights, in-place acc.
    batch, seq, d_model, d_ff = 2, 8, 32, 64
    kx, kp, key = jax.random.split(key, 3)
    x = jax.random.normal(kx, (batch, seq, d_model), jnp.float32)
    w1, b1, w2, b2 = init_feed_forward_params(kp, d_model, d_ff)
    out = jax.block_until_ready(feed_forward(x, w1, b1, w2, b2))
    ref = _reference(x, w1, b1, w2, b2)
    assert out.shape == (batch, seq, d_model)
    assert jnp.allclose(out, ref, atol=1e-5, rtol=1e-5), "test1 mismatch"

    # Test 2: ragged M (batch*seq = 15, no activation padding) with forced
    # small tiles so all three grid axes and the masked tail block are used.
    batch, seq, d_model, d_ff = 3, 5, 256, 512
    kx, kp, key = jax.random.split(key, 3)
    x = jax.random.normal(kx, (batch, seq, d_model), jnp.float32)
    w1, b1, w2, b2 = init_feed_forward_params(kp, d_model, d_ff)
    out = jax.block_until_ready(
        feed_forward(x, w1, b1, w2, b2, tm=8, tn=128, tf=128))
    ref = _reference(x, w1, b1, w2, b2)
    assert out.shape == (batch, seq, d_model)
    assert jnp.allclose(out, ref, atol=2e-4, rtol=2e-4), "test2 mismatch"

    # Test 3: bf16 path (fp32 scratch-accumulator kernel), loose tolerance.
    batch, seq, d_model, d_ff = 2, 8, 128, 384
    kx, kp, key = jax.random.split(key, 3)
    x = jax.random.normal(kx, (batch, seq, d_model),
                          jnp.float32).astype(jnp.bfloat16)
    w1, b1, w2, b2 = init_feed_forward_params(kp, d_model, d_ff,
                                              dtype=jnp.bfloat16)
    out = jax.block_until_ready(feed_forward(x, w1, b1, w2, b2))
    ref = _reference(x.astype(jnp.float32), w1.astype(jnp.float32),
                     b1.astype(jnp.float32), w2.astype(jnp.float32),
                     b2.astype(jnp.float32))
    assert out.shape == (batch, seq, d_model)
    assert jnp.allclose(out.astype(jnp.float32), ref,
                        atol=5e-2, rtol=5e-2), "test3 mismatch"

    print("KERNEL_OK")
</pallas_src>

<mosaic_0001>
module attributes {stable_mosaic.version = 11 : i64} {
  func.func @_ffn_kernel_inplace(%arg0: i32, %arg1: i32, %arg2: i32, %arg3: memref<16x32xf32, #tpu.memory_space<vmem>>, %arg4: memref<32x64xf32, #tpu.memory_space<vmem>>, %arg5: memref<1x64xf32, #tpu.memory_space<vmem>>, %arg6: memref<64x32xf32, #tpu.memory_space<vmem>>, %arg7: memref<1x32xf32, #tpu.memory_space<vmem>>, %arg8: memref<16x32xf32, #tpu.memory_space<vmem>>) attributes {dimension_semantics = [#tpu.dimension_semantics<parallel>, #tpu.dimension_semantics<parallel>, #tpu.dimension_semantics<arbitrary>], iteration_bounds = array<i64: 1, 1, 1>, scalar_prefetch = 0 : i64, scratch_operands = 0 : i64, tpu.core_type = #tpu.core_type<tc>, window_params = [{transform_indices = @transform_0, window_bounds = array<i64: 16, 32>}, {transform_indices = @transform_1, window_bounds = array<i64: 32, 64>}, {transform_indices = @transform_2, window_bounds = array<i64: 1, 64>}, {transform_indices = @transform_3, window_bounds = array<i64: 64, 32>}, {transform_indices = @transform_4, window_bounds = array<i64: 1, 32>}, {transform_indices = @transform_5, window_bounds = array<i64: 16, 32>}]} {
    %c0_i32 = arith.constant 0 : i32
    %0 = arith.cmpi eq, %arg2, %c0_i32 : i32
    %1 = arith.extui %0 : i1 to i32
    %c0_i32_0 = arith.constant 0 : i32
    %2 = arith.cmpi ne, %1, %c0_i32_0 : i32
    scf.if %2 {
      %c0_14 = arith.constant 0 : index
      %c0_15 = arith.constant 0 : index
      %16 = vector.load %arg7[%c0_14, %c0_15] : memref<1x32xf32, #tpu.memory_space<vmem>>, vector<1x32xf32>
      %17 = vector.shape_cast %16 : vector<1x32xf32> to vector<1x32xf32>
      %18 = vector.broadcast %17 : vector<1x32xf32> to vector<16x32xf32>
      %c0_16 = arith.constant 0 : index
      %c0_17 = arith.constant 0 : index
      %19 = vector.load %arg8[%c0_16, %c0_17] : memref<16x32xf32, #tpu.memory_space<vmem>>, vector<16x32xf32>
      tpu.vector_store %arg8[%c0_16, %c0_17], %18 {strides = array<i32>} : memref<16x32xf32, #tpu.memory_space<vmem>>, vector<16x32xf32>,
    } else {
    }
    %c0 = arith.constant 0 : index
    %c0_1 = arith.constant 0 : index
    %3 = vector.load %arg3[%c0, %c0_1] : memref<16x32xf32, #tpu.memory_space<vmem>>, vector<16x32xf32>
    %c0_2 = arith.constant 0 : index
    %c0_3 = arith.constant 0 : index
    %4 = vector.load %arg4[%c0_2, %c0_3] : memref<32x64xf32, #tpu.memory_space<vmem>>, vector<32x64xf32>
    %cst = arith.constant dense<0.000000e+00> : vector<16x64xf32>
    %5 = tpu.matmul %3, %4, %cst {dimension_numbers = #tpu.dot_dimension_numbers<[1], [0], [0], [1], [0, 0, 1, 1], [], []>} : vector<16x32xf32>, vector<32x64xf32>, vector<16x64xf32> -> vector<16x64xf32>
    %c0_4 = arith.constant 0 : index
    %c0_5 = arith.constant 0 : index
    %6 = vector.load %arg5[%c0_4, %c0_5] : memref<1x64xf32, #tpu.memory_space<vmem>>, vector<1x64xf32>
    %7 = vector.broadcast %6 : vector<1x64xf32> to vector<16x64xf32>
    %8 = arith.addf %5, %7 : vector<16x64xf32>
    %cst_6 = arith.constant 0.000000e+00 : f32
    %9 = vector.broadcast %cst_6 : f32 to vector<16x64xf32>
    %10 = arith.maximumf %8, %9 : vector<16x64xf32>
    %c0_7 = arith.constant 0 : index
    %c0_8 = arith.constant 0 : index
    %11 = vector.load %arg8[%c0_7, %c0_8] : memref<16x32xf32, #tpu.memory_space<vmem>>, vector<16x32xf32>
    %c0_9 = arith.constant 0 : index
    %c0_10 = arith.constant 0 : index
    %12 = vector.load %arg6[%c0_9, %c0_10] : memref<64x32xf32, #tpu.memory_space<vmem>>, vector<64x32xf32>
    %cst_11 = arith.constant dense<0.000000e+00> : vector<16x32xf32>
    %13 = tpu.matmul %10, %12, %cst_11 {dimension_numbers = #tpu.dot_dimension_numbers<[1], [0], [0], [1], [0, 0, 1, 1], [], []>} : vector<16x64xf32>, vector<64x32xf32>, vector<16x32xf32> -> vector<16x32xf32>
    %14 = arith.addf %11, %13 : vector<16x32xf32>
    %c0_12 = arith.constant 0 : index
    %c0_13 = arith.constant 0 : index
    %15 = vector.load %arg8[%c0_12, %c0_13] : memref<16x32xf32, #tpu.memory_space<vmem>>, vector<16x32xf32>
    tpu.vector_store %arg8[%c0_12, %c0_13], %14 {strides = array<i32>} : memref<16x32xf32, #tpu.memory_space<vmem>>, vector<16x32xf32>,
    return
  }
  func.func @transform_0(%arg0: i32, %arg1: i32, %arg2: i32) -> (i32, i32) {
    %c0_i32 = arith.constant 0 : i32
    %c0_i32_0 = arith.constant 0 : i32
    return %arg0, %c0_i32 : i32, i32
  }
  func.func @transform_1(%arg0: i32, %arg1: i32, %arg2: i32) -> (i32, i32) {
    %c0_i32 = arith.constant 0 : i32
    %c0_i32_0 = arith.constant 0 : i32
    return %c0_i32, %arg2 : i32, i32
  }
  func.func @transform_2(%arg0: i32, %arg1: i32, %arg2: i32) -> (i32, i32) {
    %c0_i32 = arith.constant 0 : i32
    %c0_i32_0 = arith.constant 0 : i32
    return %c0_i32, %arg2 : i32, i32
  }
  func.func @transform_3(%arg0: i32, %arg1: i32, %arg2: i32) -> (i32, i32) {
    %c0_i32 = arith.constant 0 : i32
    return %arg2, %arg1 : i32, i32
  }
  func.func @transform_4(%arg0: i32, %arg1: i32, %arg2: i32) -> (i32, i32) {
    %c0_i32 = arith.constant 0 : i32
    %c0_i32_0 = arith.constant 0 : i32
    return %c0_i32, %arg1 : i32, i32
  }
  func.func @transform_5(%arg0: i32, %arg1: i32, %arg2: i32) -> (i32, i32) {
    %c0_i32 = arith.constant 0 : i32
    return %arg0, %arg1 : i32, i32
  }
}

</mosaic_0001>

<llo_original>
// kernel: tpu_custom_call.1
$region0: #{tpu_custom_call.1}
  #allocation0 [shape = 'u32[]', space=smem, size = 0x4, offset = 0x4, fixed_abs, tag = 'smem constant byte address 0x4 - core index']
  #allocation1 [shape = 'u32[144,128]{1,0:T(1,128)}', space=vmem, size = 0x12000, scoped, tag = 'internal scratch']
  %s0 = inlined_call_operand.vmem [shape: f32[16,32], index: 0, kind: input, shape index: {}]
  %s1 = inlined_call_operand.vmem [shape: f32[32,64], index: 1, kind: input, shape index: {}]
  %s2 = inlined_call_operand.vmem [shape: f32[1,64], index: 2, kind: input, shape index: {}]
  %s3 = inlined_call_operand.vmem [shape: f32[64,32], index: 3, kind: input, shape index: {}]
  %s4 = inlined_call_operand.vmem [shape: f32[1,32], index: 4, kind: input, shape index: {}]
  %s5 = inlined_call_operand.hbm [shape: f32[16,32], index: 5, kind: output, shape index: {}]
  %s6 = sld [smem:[#allocation0]]
  $region34: #{tpu_custom_call.1} parent=0
    _
  %s8 = ssub.s32 1, %s6
  %s9 = scalar_select 0, %s8, %s6
  $region1: #{tpu_custom_call.1} parent=0
    #allocation2 [shape = 'u8[8192]{0}', space=vmem, size = 0x2000, scoped, tag = 'output window, operand 0, single buffered']
    #allocation3 [shape = 's32[1]{0}', space=sflag, size = 0x4, scoped, tag = 'scoped memory for tpu_custom_call.1']
    %10 = vsyncpa [#allocation3], 0
    // Predicated region
    $region2: #{tpu_custom_call.1} parent=1 // pred_check
      _
    $region3: #{tpu_custom_call.1} parent=1 // pred_check_branch
      %12 = sbr.rel (0) target = $region5
    $region4: #{tpu_custom_call.1} parent=1 // pred_region
      _
    $region5: #{tpu_custom_call.1} parent=1 // pred_fallthru
      _
    // Predicated region
    $region6: #{tpu_custom_call.1} parent=1 // pred_check
      _
    $region7: #{tpu_custom_call.1} parent=1 // pred_check_branch
      %14 = sbr.rel (0) target = $region9
    $region8: #{tpu_custom_call.1} parent=1 // pred_region
      _
    $region9: #{tpu_custom_call.1} parent=1 // pred_fallthru
      _
    // Predicated region
    $region10: #{tpu_custom_call.1} parent=1 // pred_check
      _
    $region11: #{tpu_custom_call.1} parent=1 // pred_check_branch
      %16 = sbr.rel (0) target = $region13
    $region12: #{tpu_custom_call.1} parent=1 // pred_region
      _
    $region13: #{tpu_custom_call.1} parent=1 // pred_fallthru
      _
    // Predicated region
    $region14: #{tpu_custom_call.1} parent=1 // pred_check
      _
    $region15: #{tpu_custom_call.1} parent=1 // pred_check_branch
      %18 = sbr.rel (0) target = $region17
    $region16: #{tpu_custom_call.1} parent=1 // pred_region
      _
    $region17: #{tpu_custom_call.1} parent=1 // pred_fallthru
      _
    // Predicated region
    $region18: #{tpu_custom_call.1} parent=1 // pred_check
      _
    $region19: #{tpu_custom_call.1} parent=1 // pred_check_branch
      %20 = sbr.rel (0) target = $region21
    $region20: #{tpu_custom_call.1} parent=1 // pred_region
      _
    $region21: #{tpu_custom_call.1} parent=1 // pred_fallthru
      _
    %p21 = scmp.eq.s32.totalorder 0, 0
    // Predicated region
    $region22: #{tpu_custom_call.1} parent=1 // pred_check
      %p22 = pneg %p21
    $region23: #{tpu_custom_call.1} parent=1 // pred_check_branch
      %24 = sbr.rel (%p22) target = $region25
    $region24: #{tpu_custom_call.1} parent=1 // pred_region
      %v25 = vld [vmem:[%s4] sm:$0x1]
      %v27 = vlaneseq
      %v28 = vshrl.u32 %v27, 7
      %v29 = vsub.s32 0, %v28
      %v30 = vrot.slane %v25, %v29
      %vm32 = vcmask 261120
      %33 = vst.msk [vmem:[#allocation2] sm:$0xff] %vm32, %v30
      %34 = vst.msk [vmem:[#allocation2 + $0x8] sm:$0xff] %vm32, %v30
    $region25: #{tpu_custom_call.1} parent=1 // pred_fallthru
      _
    %v35 = vld [vmem:[%s0] sm:$0xff]
    %v36 = vld [vmem:[%s0 + $0x8] sm:$0xff]
    %v37 = vld [vmem:[%s1] sm:$0xff]
    %v38 = vld [vmem:[%s1 + $0x8] sm:$0xff]
    %v39 = vld [vmem:[%s1 + $0x10] sm:$0xff]
    %v40 = vld [vmem:[%s1 + $0x18] sm:$0xff]
    %v41 = vld [vmem:[%s2] sm:$0x1]
    %v43 = vlaneseq
    %v44 = vshrl.u32 %v43, 7
    %v45 = vsub.s32 0, %v44
    %v46 = vrot.slane %v41, %v45
    %vm48 = vcmask 261120
    %v50 = vsel %vm48, %v35, 0
    %v53 = vsel %vm48, %v36, 0
    %55 = vmatprep.subr.mxu0 0.0
    %56 = vmatpush1.msra.mxu0 %v37
    %57 = vmatprep.subr.mxu0 0.0
    %58 = vmatpush1.msra.mxu0 %v38
    %59 = vmatprep.subr.mxu0 0.0
    %60 = vmatpush1.msra.mxu0 %v39
    %61 = vmatprep.subr.mxu0 0.0
    %62 = vmatpush1.msra.mxu0 %v40
    %63 = vmatprep.subr.mxu0 0.0
    %64 = vmatpush1.msra.mxu0 0.0
    %65 = vmatprep.subr.mxu0 0.0
    %66 = vmatpush1.msra.mxu0 0.0
    %67 = vmatprep.subr.mxu0 0.0
    %68 = vmatpush1.msra.mxu0 0.0
    %69 = vmatprep.subr.mxu0 0.0
    %70 = vmatpush1.msra.mxu0 0.0
    %71 = vmatprep.subr.mxu0 0.0
    %72 = vmatpush1.msra.mxu0 0.0
    %73 = vmatprep.subr.mxu0 0.0
    %74 = vmatpush1.msra.mxu0 0.0
    %75 = vmatprep.subr.mxu0 0.0
    %76 = vmatpush1.msra.mxu0 0.0
    %77 = vmatprep.subr.mxu0 0.0
    %78 = vmatpush1.msra.mxu0 0.0
    %79 = vmatprep.subr.mxu0 0.0
    %80 = vmatpush1.msra.mxu0 0.0
    %81 = vmatprep.subr.mxu0 0.0
    %82 = vmatpush1.msra.mxu0 0.0
    %83 = vmatprep.subr.mxu0 0.0
    %84 = vmatpush1.msra.mxu0 0.0
    %85 = vmatprep.subr.mxu0 0.0
    %86 = vmatpush1.msra.mxu0 0.0
    %87 = vmatprep.subr.mxu0 0.0
    %88 = vmatpush1.msra.mxu0 0.0
    %89 = vmatprep.subr.mxu0 0.0
    %90 = vmatpush1.msra.mxu0 0.0
    %91 = vmatprep.subr.mxu0 0.0
    %92 = vmatpush1.msra.mxu0 0.0
    %93 = vmatprep.subr.mxu0 0.0
    %94 = vmatpush1.msra.mxu0 0.0
    %95 = vmatprep.subr.mxu0 0.0
    %96 = vmatpush1.msra.mxu0 0.0
    %97 = vmatprep.subr.mxu0 0.0
    %98 = vmatpush1.msra.mxu0 0.0
    %99 = vmatprep.subr.mxu0 0.0
    %100 = vmatpush1.msra.mxu0 0.0
    %101 = vmatprep.subr.mxu0 0.0
    %102 = vmatpush1.msra.mxu0 0.0
    %103 = vmatprep.subr.mxu0 0.0
    %104 = vmatpush1.msra.mxu0 0.0
    %105 = vmatprep.subr.mxu0 0.0
    %106 = vmatpush1.msra.mxu0 0.0
    %107 = vmatprep.subr.mxu0 0.0
    %108 = vmatpush1.msra.mxu0 0.0
    %109 = vmatprep.subr.mxu0 0.0
    %110 = vmatpush1.msra.mxu0 0.0
    %111 = vmatprep.subr.mxu0 0.0
    %112 = vmatpush1.msra.mxu0 0.0
    %113 = vmatprep.subr.mxu0 0.0
    %114 = vmatpush1.msra.mxu0 0.0
    %115 = vmatprep.subr.mxu0 0.0
    %116 = vmatpush1.msra.mxu0 0.0
    %117 = vmatprep.subr.mxu0 0.0
    %118 = vmatpush1.msra.mxu0 0.0
    %119 = vmatprep.mubr.f32.mxu0 0.0
    %120 = vmatmul.mubr.f32.gmra.mrb[0].mxu0 %v50
    %v121 = vpop.f32.mrb[0].mxu0
    %v122 = vadd.f32 %v46, %v121
    %v123 = vpop.f32.mrb[0].mxu0
    %124 = vmatprep.mubr.f32.mxu0 0.0
    %125 = vmatmul.mubr.f32.gmra.mrb[0].mxu0 %v53
    %v126 = vpop.f32.mrb[0].mxu0
    %v127 = vadd.f32 %v46, %v126
    %v128 = vpop.f32.mrb[0].mxu0
    %129 = vdwg.mxu0
    %v130 = vmax.f32 %v122, 0.0
    %v131 = vmax.f32 %v127, 0.0
    %v132 = vld [vmem:[#allocation2] sm:$0xff]
    %v133 = vld [vmem:[#allocation2 + $0x8] sm:$0xff]
    %v134 = vld [vmem:[%s3] sm:$0xff]
    %v135 = vld [vmem:[%s3 + $0x8] sm:$0xff]
    %v136 = vld [vmem:[%s3 + $0x10] sm:$0xff]
    %v137 = vld [vmem:[%s3 + $0x18] sm:$0xff]
    %v138 = vld [vmem:[%s3 + $0x20] sm:$0xff]
    %v139 = vld [vmem:[%s3 + $0x28] sm:$0xff]
    %v140 = vld [vmem:[%s3 + $0x30] sm:$0xff]
    %v141 = vld [vmem:[%s3 + $0x38] sm:$0xff]
    %vm142 = vcmask 523264
    %v144 = vsel %vm142, %v130, 0
    %v147 = vsel %vm142, %v131, 0
    %149 = vmatprep.subr.mxu0 0.0
    %150 = vmatpush1.msra.mxu0 %v134
    %151 = vmatprep.subr.mxu0 0.0
    %152 = vmatpush1.msra.mxu0 %v135
    %153 = vmatprep.subr.mxu0 0.0
    %154 = vmatpush1.msra.mxu0 %v136
    %155 = vmatprep.subr.mxu0 0.0
    %156 = vmatpush1.msra.mxu0 %v137
    %157 = vmatprep.subr.mxu0 0.0
    %158 = vmatpush1.msra.mxu0 %v138
    %159 = vmatprep.subr.mxu0 0.0
    %160 = vmatpush1.msra.mxu0 %v139
    %161 = vmatprep.subr.mxu0 0.0
    %162 = vmatpush1.msra.mxu0 %v140
    %163 = vmatprep.subr.mxu0 0.0
    %164 = vmatpush1.msra.mxu0 %v141
    %165 = vmatprep.subr.mxu0 0.0
    %166 = vmatpush1.msra.mxu0 0.0
    %167 = vmatprep.subr.mxu0 0.0
    %168 = vmatpush1.msra.mxu0 0.0
    %169 = vmatprep.subr.mxu0 0.0
    %170 = vmatpush1.msra.mxu0 0.0
    %171 = vmatprep.subr.mxu0 0.0
    %172 = vmatpush1.msra.mxu0 0.0
    %173 = vmatprep.subr.mxu0 0.0
    %174 = vmatpush1.msra.mxu0 0.0
    %175 = vmatprep.subr.mxu0 0.0
    %176 = vmatpush1.msra.mxu0 0.0
    %177 = vmatprep.subr.mxu0 0.0
    %178 = vmatpush1.msra.mxu0 0.0
    %179 = vmatprep.subr.mxu0 0.0
    %180 = vmatpush1.msra.mxu0 0.0
    %181 = vmatprep.subr.mxu0 0.0
    %182 = vmatpush1.msra.mxu0 0.0
    %183 = vmatprep.subr.mxu0 0.0
    %184 = vmatpush1.msra.mxu0 0.0
    %185 = vmatprep.subr.mxu0 0.0
    %186 = vmatpush1.msra.mxu0 0.0
    %187 = vmatprep.subr.mxu0 0.0
    %188 = vmatpush1.msra.mxu0 0.0
    %189 = vmatprep.subr.mxu0 0.0
    %190 = vmatpush1.msra.mxu0 0.0
    %191 = vmatprep.subr.mxu0 0.0
    %192 = vmatpush1.msra.mxu0 0.0
    %193 = vmatprep.subr.mxu0 0.0
    %194 = vmatpush1.msra.mxu0 0.0
    %195 = vmatprep.subr.mxu0 0.0
    %196 = vmatpush1.msra.mxu0 0.0
    %197 = vmatprep.subr.mxu0 0.0
    %198 = vmatpush1.msra.mxu0 0.0
    %199 = vmatprep.subr.mxu0 0.0
    %200 = vmatpush1.msra.mxu0 0.0
    %201 = vmatprep.subr.mxu0 0.0
    %202 = vmatpush1.msra.mxu0 0.0
    %203 = vmatprep.subr.mxu0 0.0
    %204 = vmatpush1.msra.mxu0 0.0
    %205 = vmatprep.subr.mxu0 0.0
    %206 = vmatpush1.msra.mxu0 0.0
    %207 = vmatprep.subr.mxu0 0.0
    %208 = vmatpush1.msra.mxu0 0.0
    %209 = vmatprep.subr.mxu0 0.0
    %210 = vmatpush1.msra.mxu0 0.0
    %211 = vmatprep.subr.mxu0 0.0
    %212 = vmatpush1.msra.mxu0 0.0
    %213 = vmatprep.mubr.f32.mxu0 0.0
    %214 = vmatmul.mubr.f32.gmra.mrb[0].mxu0 %v144
    %v215 = vpop.f32.mrb[0].mxu0
    %v216 = vadd.f32 0.0, %v215
    %v217 = vpop.f32.mrb[0].mxu0
    %218 = vmatprep.mubr.f32.mxu0 0.0
    %219 = vmatmul.mubr.f32.gmra.mrb[0].mxu0 %v147
    %v220 = vpop.f32.mrb[0].mxu0
    %v221 = vadd.f32 0.0, %v220
    %v222 = vpop.f32.mrb[0].mxu0
    %223 = vdwg.mxu0
    %v224 = vadd.f32 %v132, %v216
    %v225 = vadd.f32 %v133, %v221
    %226 = vst.msk [vmem:[#allocation2] sm:$0xff] %vm48, %v224
    %227 = vst.msk [vmem:[#allocation2 + $0x8] sm:$0xff] %vm48, %v225
    // Predicated region
    $region26: #{tpu_custom_call.1} parent=1 // pred_check
      _
    $region27: #{tpu_custom_call.1} parent=1 // pred_check_branch
      %229 = sbr.rel (0) target = $region29
    $region28: #{tpu_custom_call.1} parent=1 // pred_region
      %s231 = ssub.s32 256, 256
      %232 = vsyncadd [#allocation3], %s231
      %s233 = sshll.u32 [#allocation2], 4
      %s234 = int_to_ptr.vmem [resolvable:$true] %s233
      %239 = dma.vmem_to_hbm [thread:$0]  %s234, 256, %s5, [#allocation3], 128, 128, 8
    $region29: #{tpu_custom_call.1} parent=1 // pred_fallthru
      _
    // Predicated region
    $region30: #{tpu_custom_call.1} parent=1 // pred_check
      _
    $region31: #{tpu_custom_call.1} parent=1 // pred_check_branch
      %241 = sbr.rel (0) target = $region33
    $region32: #{tpu_custom_call.1} parent=1 // pred_region
      %242 = dma.done [#allocation3], 256
    $region33: #{tpu_custom_call.1} parent=1 // pred_fallthru
      _
    %243 = vsyncpa [#allocation3], 1

</llo_original>
